<compile_context>
chip_gen: v7x
topology: tpu7x:2x2x1
jax: 0.10.0
libtpu: 0.0.40
codegen_flags: <defaults>
</compile_context>

<pallas_src>
import functools

import jax
import jax.numpy as jnp
from jax import lax
from jax.experimental import pallas as pl
from jax.experimental.pallas import tpu as pltpu


def _gelu_exact(x):
    # torch.nn.functional.gelu default (erf formulation), in f32.
    return 0.5 * x * (1.0 + lax.erf(x * 0.7071067811865476))


def prenorm_ffn_kernel(x_ref, w1a_ref, w1g_ref, b1a_ref, b1g_ref,
                       w2_ref, b2_ref, gamma_ref, beta_ref,
                       o_ref, y_ref, acc_ref, *, eps):
    k = pl.program_id(1)

    @pl.when(k == 0)
    def _():
        # LayerNorm(x) in f32, cached once per token tile as the bf16 MXU input.
        x = x_ref[...].astype(jnp.float32)                  # (tm, dim)
        mean = jnp.mean(x, axis=-1, keepdims=True)
        xc = x - mean
        var = jnp.mean(xc * xc, axis=-1, keepdims=True)
        inv = lax.rsqrt(var + eps)
        y = xc * inv * gamma_ref[...] + beta_ref[...]
        y_ref[...] = y.astype(y_ref.dtype)
        acc_ref[...] = jnp.zeros_like(acc_ref)

    y = y_ref[...]                                          # (tm, dim) bf16
    # Linear1 halves (bf16 in, f32 accumulate) + GEGLU in f32.
    a = jnp.dot(y, w1a_ref[...], preferred_element_type=jnp.float32) + b1a_ref[...]
    g = jnp.dot(y, w1g_ref[...], preferred_element_type=jnp.float32) + b1g_ref[...]
    u = a * _gelu_exact(g)                                  # (tm, tk_h) f32
    # Linear2 partial product accumulated over hidden chunks.
    acc_ref[...] += jnp.dot(u.astype(w2_ref.dtype), w2_ref[...],
                            preferred_element_type=jnp.float32)

    @pl.when(k == pl.num_programs(1) - 1)
    def _():
        o_ref[...] = (acc_ref[...] + b2_ref[...]).astype(o_ref.dtype)


def _round_up(x, m):
    return (x + m - 1) // m * m


def prenorm_ffn(x, w1, b1, w2, b2, gamma, beta, *, eps=1e-5,
                tm=256, tk_h=512, matmul_dtype=jnp.bfloat16,
                single_buffer_invariants=True):
    """x: (N, dim) f32. Weights in math convention: h = x @ W + b.

    w1: (dim, 2*hidden), b1: (2*hidden,), w2: (hidden, dim), b2/gamma/beta: (dim,).
    """
    n_tok, dim = x.shape
    hidden = w1.shape[1] // 2
    assert w1.shape == (dim, 2 * hidden)
    assert w2.shape == (hidden, dim)

    # Token tile: as big as possible (MXU-dense) without exceeding the problem.
    tm = max(8, min(tm, _round_up(n_tok, 8)))
    n_pad = _round_up(n_tok, tm)
    if n_pad != n_tok:
        x = jnp.pad(x, ((0, n_pad - n_tok), (0, 0)))        # zero rows are harmless

    # Hidden chunk for the reduction axis (bounds resident weight VMEM).
    tk_h = min(tk_h, hidden)
    assert hidden % tk_h == 0, "hidden must be divisible by the hidden chunk"
    if tk_h != hidden:
        assert tk_h % 128 == 0, "hidden chunk must be lane-aligned"

    # Split Linear1 into value/gate halves (no lane slicing inside the kernel);
    # matmul operands in bf16, bias / LayerNorm params in f32.
    w1a = w1[:, :hidden].astype(matmul_dtype)
    w1g = w1[:, hidden:].astype(matmul_dtype)
    w2c = w2.astype(matmul_dtype)
    b1a = b1[:hidden].reshape(1, hidden).astype(jnp.float32)
    b1g = b1[hidden:].reshape(1, hidden).astype(jnp.float32)
    b2r = b2.reshape(1, dim).astype(jnp.float32)
    gammar = gamma.reshape(1, dim).astype(jnp.float32)
    betar = beta.reshape(1, dim).astype(jnp.float32)

    grid = (n_pad // tm, hidden // tk_h)

    def inv_spec(shape):
        # Grid-invariant operands: single-buffer (double buffering is pure VMEM waste).
        if single_buffer_invariants:
            return pl.BlockSpec(shape, lambda i, k: (0, 0),
                                pipeline_mode=pl.Buffered(1))
        return pl.BlockSpec(shape, lambda i, k: (0, 0))

    in_specs = [
        pl.BlockSpec((tm, dim), lambda i, k: (i, 0)),        # x tile
        pl.BlockSpec((dim, tk_h), lambda i, k: (0, k)),      # W1a chunk
        pl.BlockSpec((dim, tk_h), lambda i, k: (0, k)),      # W1g chunk
        pl.BlockSpec((1, tk_h), lambda i, k: (0, k)),        # b1a chunk
        pl.BlockSpec((1, tk_h), lambda i, k: (0, k)),        # b1g chunk
        pl.BlockSpec((tk_h, dim), lambda i, k: (k, 0)),      # W2 chunk
        inv_spec((1, dim)),                                  # b2
        inv_spec((1, dim)),                                  # gamma
        inv_spec((1, dim)),                                  # beta
    ]

    # Explicit scoped-VMEM budget: tiles + double-buffered weight chunks + slack.
    bpe = jnp.dtype(matmul_dtype).itemsize
    est = (2 * 3 * dim * tk_h * bpe            # W1a/W1g/W2 chunks, double-buffered
           + 2 * (2 * tk_h + 3 * dim) * 4      # bias / LayerNorm vectors
           + 2 * 2 * tm * dim * 4              # x in + out tiles, double-buffered
           + tm * dim * (4 + bpe)              # f32 accumulator + bf16 LN scratch
           + 6 * tm * tk_h * 4)                # live a/g/u intermediates + slack
    vmem_limit = int(min(max(2 * est, 32 * 2**20), 64 * 2**20))

    kernel = functools.partial(prenorm_ffn_kernel, eps=eps)

    out = pl.pallas_call(
        kernel,
        out_shape=jax.ShapeDtypeStruct((n_pad, dim), x.dtype),
        grid_spec=pltpu.PrefetchScalarGridSpec(
            num_scalar_prefetch=0,
            grid=grid,
            in_specs=in_specs,
            out_specs=pl.BlockSpec((tm, dim), lambda i, k: (i, 0)),
            scratch_shapes=[
                pltpu.VMEM((tm, dim), matmul_dtype),   # cached LayerNorm(x), bf16
                pltpu.VMEM((tm, dim), jnp.float32),    # FFN output accumulator
            ],
        ),
        compiler_params=pltpu.CompilerParams(
            dimension_semantics=("parallel", "arbitrary"),
            vmem_limit_bytes=vmem_limit,
        ),
    )(x, w1a, w1g, b1a, b1g, w2c, b2r, gammar, betar)

    return out[:n_tok]


def prenorm_ffn_ref(x, w1, b1, w2, b2, gamma, beta, eps=1e-5,
                    matmul_dtype=jnp.float32):
    mean = jnp.mean(x, axis=-1, keepdims=True)
    var = jnp.mean((x - mean) ** 2, axis=-1, keepdims=True)
    y = (x - mean) * lax.rsqrt(var + eps) * gamma + beta
    hidden = w1.shape[1] // 2
    ym = y.astype(matmul_dtype)
    a = jnp.dot(ym, w1[:, :hidden].astype(matmul_dtype),
                preferred_element_type=jnp.float32) + b1[:hidden]
    g = jnp.dot(ym, w1[:, hidden:].astype(matmul_dtype),
                preferred_element_type=jnp.float32) + b1[hidden:]
    u = a * _gelu_exact(g)
    return jnp.dot(u.astype(matmul_dtype), w2.astype(matmul_dtype),
                   preferred_element_type=jnp.float32) + b2


if __name__ == "__main__":
    # Small shapes consistent with the module: batch=2, seq=8, dim=32, multi=4.
    batch, seq, dim, multi = 2, 8, 32, 4
    hidden = dim * multi

    key = jax.random.PRNGKey(0)
    kx, k1, kb1, k2, kb2 = jax.random.split(key, 5)

    x = jax.random.normal(kx, (batch, seq, dim), dtype=jnp.float32)

    # Parameters in math convention: h = x @ W + b (W = torch_weight.T).
    w1 = jax.random.normal(k1, (dim, 2 * hidden), dtype=jnp.float32) * 0.05
    b1 = jax.random.normal(kb1, (2 * hidden,), dtype=jnp.float32) * 0.05
    w2 = jax.random.normal(k2, (hidden, dim), dtype=jnp.float32) * 0.05
    b2 = jax.random.normal(kb2, (dim,), dtype=jnp.float32) * 0.05
    gamma = jnp.ones((dim,), dtype=jnp.float32)   # LayerNorm weight
    beta = jnp.zeros((dim,), dtype=jnp.float32)   # LayerNorm bias

    x2d = x.reshape(batch * seq, dim)

    def run(single_buffer):
        return prenorm_ffn(x2d, w1, b1, w2, b2, gamma, beta,
                           single_buffer_invariants=single_buffer)

    try:
        out2d = run(True)
    except Exception:
        # pl.Buffered(1) pipeline_mode unsupported on this jax build; the
        # invariant operands are tiny, so default double-buffering is harmless.
        out2d = run(False)

    out = out2d.reshape(batch, seq, dim)
    jax.block_until_ready(out)

    # Tight check vs a reference with identical numerics (bf16 matmuls, f32
    # elementwise), plus a sanity check vs the pure-f32 reference.
    ref_bf16 = prenorm_ffn_ref(x2d, w1, b1, w2, b2, gamma, beta,
                               matmul_dtype=jnp.bfloat16).reshape(batch, seq, dim)
    ref_f32 = prenorm_ffn_ref(x2d, w1, b1, w2, b2, gamma, beta,
                              matmul_dtype=jnp.float32).reshape(batch, seq, dim)
    assert jnp.allclose(out, ref_bf16, atol=2e-3, rtol=2e-3), "mismatch vs matched ref"
    assert jnp.allclose(out, ref_f32, atol=5e-2, rtol=5e-2), "mismatch vs f32 ref"

    print("KERNEL_OK")
</pallas_src>

<mosaic_0001>
module attributes {stable_mosaic.version = 11 : i64} {
  func.func @prenorm_ffn_kernel(%arg0: i32, %arg1: i32, %arg2: memref<16x32xf32, #tpu.memory_space<vmem>>, %arg3: memref<32x128xbf16, #tpu.memory_space<vmem>>, %arg4: memref<32x128xbf16, #tpu.memory_space<vmem>>, %arg5: memref<1x128xf32, #tpu.memory_space<vmem>>, %arg6: memref<1x128xf32, #tpu.memory_space<vmem>>, %arg7: memref<128x32xbf16, #tpu.memory_space<vmem>>, %arg8: memref<1x32xf32, #tpu.memory_space<vmem>>, %arg9: memref<1x32xf32, #tpu.memory_space<vmem>>, %arg10: memref<1x32xf32, #tpu.memory_space<vmem>>, %arg11: memref<16x32xf32, #tpu.memory_space<vmem>>, %arg12: memref<16x32xbf16, #tpu.memory_space<vmem>>, %arg13: memref<16x32xf32, #tpu.memory_space<vmem>>) attributes {dimension_semantics = [#tpu.dimension_semantics<parallel>, #tpu.dimension_semantics<arbitrary>], iteration_bounds = array<i64: 1, 1>, scalar_prefetch = 0 : i64, scratch_operands = 2 : i64, tpu.core_type = #tpu.core_type<tc>, window_params = [{transform_indices = @transform_0, window_bounds = array<i64: 16, 32>}, {transform_indices = @transform_1, window_bounds = array<i64: 32, 128>}, {transform_indices = @transform_2, window_bounds = array<i64: 32, 128>}, {transform_indices = @transform_3, window_bounds = array<i64: 1, 128>}, {transform_indices = @transform_4, window_bounds = array<i64: 1, 128>}, {transform_indices = @transform_5, window_bounds = array<i64: 128, 32>}, {pipeline_mode = #tpu.pipeline_mode<synchronous>, transform_indices = @transform_6, window_bounds = array<i64: 1, 32>}, {pipeline_mode = #tpu.pipeline_mode<synchronous>, transform_indices = @transform_7, window_bounds = array<i64: 1, 32>}, {pipeline_mode = #tpu.pipeline_mode<synchronous>, transform_indices = @transform_8, window_bounds = array<i64: 1, 32>}, {transform_indices = @transform_9, window_bounds = array<i64: 16, 32>}]} {
    %c0_i32 = arith.constant 0 : i32
    %0 = arith.cmpi eq, %arg1, %c0_i32 : i32
    %1 = arith.extui %0 : i1 to i32
    %c0_i32_0 = arith.constant 0 : i32
    %2 = arith.cmpi ne, %1, %c0_i32_0 : i32
    scf.if %2 {
      %c0_23 = arith.constant 0 : index
      %c0_24 = arith.constant 0 : index
      %32 = vector.load %arg2[%c0_23, %c0_24] : memref<16x32xf32, #tpu.memory_space<vmem>>, vector<16x32xf32>
      %cst_25 = arith.constant dense<0.000000e+00> : vector<16xf32>
      %33 = vector.multi_reduction <add>, %32, %cst_25 [1] : vector<16x32xf32> to vector<16xf32>
      %34 = vector.shape_cast %33 : vector<16xf32> to vector<16x1xf32>
      %cst_26 = arith.constant 3.200000e+01 : f32
      %35 = vector.broadcast %cst_26 : f32 to vector<16x1xf32>
      %36 = arith.divf %34, %35 : vector<16x1xf32>
      %37 = vector.broadcast %36 : vector<16x1xf32> to vector<16x32xf32>
      %38 = arith.subf %32, %37 : vector<16x32xf32>
      %39 = arith.mulf %38, %38 : vector<16x32xf32>
      %cst_27 = arith.constant dense<0.000000e+00> : vector<16xf32>
      %40 = vector.multi_reduction <add>, %39, %cst_27 [1] : vector<16x32xf32> to vector<16xf32>
      %41 = vector.shape_cast %40 : vector<16xf32> to vector<16x1xf32>
      %cst_28 = arith.constant 3.200000e+01 : f32
      %42 = vector.broadcast %cst_28 : f32 to vector<16x1xf32>
      %43 = arith.divf %41, %42 : vector<16x1xf32>
      %cst_29 = arith.constant 9.99999974E-6 : f32
      %44 = vector.broadcast %cst_29 : f32 to vector<16x1xf32>
      %45 = arith.addf %43, %44 : vector<16x1xf32>
      %46 = math.rsqrt %45 : vector<16x1xf32>
      %47 = vector.broadcast %46 : vector<16x1xf32> to vector<16x32xf32>
      %48 = arith.mulf %38, %47 : vector<16x32xf32>
      %c0_30 = arith.constant 0 : index
      %c0_31 = arith.constant 0 : index
      %49 = vector.load %arg9[%c0_30, %c0_31] : memref<1x32xf32, #tpu.memory_space<vmem>>, vector<1x32xf32>
      %50 = vector.broadcast %49 : vector<1x32xf32> to vector<16x32xf32>
      %51 = arith.mulf %48, %50 : vector<16x32xf32>
      %c0_32 = arith.constant 0 : index
      %c0_33 = arith.constant 0 : index
      %52 = vector.load %arg10[%c0_32, %c0_33] : memref<1x32xf32, #tpu.memory_space<vmem>>, vector<1x32xf32>
      %53 = vector.broadcast %52 : vector<1x32xf32> to vector<16x32xf32>
      %54 = arith.addf %51, %53 : vector<16x32xf32>
      %55 = arith.truncf %54 : vector<16x32xf32> to vector<16x32xbf16>
      %c0_34 = arith.constant 0 : index
      %c0_35 = arith.constant 0 : index
      %56 = vector.load %arg12[%c0_34, %c0_35] : memref<16x32xbf16, #tpu.memory_space<vmem>>, vector<16x32xbf16>
      tpu.vector_store %arg12[%c0_34, %c0_35], %55 {strides = array<i32>} : memref<16x32xbf16, #tpu.memory_space<vmem>>, vector<16x32xbf16>,
      %cst_36 = arith.constant 0.000000e+00 : f32
      %57 = vector.broadcast %cst_36 : f32 to vector<16x32xf32>
      %c0_37 = arith.constant 0 : index
      %c0_38 = arith.constant 0 : index
      %58 = vector.load %arg13[%c0_37, %c0_38] : memref<16x32xf32, #tpu.memory_space<vmem>>, vector<16x32xf32>
      tpu.vector_store %arg13[%c0_37, %c0_38], %57 {strides = array<i32>} : memref<16x32xf32, #tpu.memory_space<vmem>>, vector<16x32xf32>,
    } else {
    }
    %c0 = arith.constant 0 : index
    %c0_1 = arith.constant 0 : index
    %3 = vector.load %arg12[%c0, %c0_1] : memref<16x32xbf16, #tpu.memory_space<vmem>>, vector<16x32xbf16>
    %c0_2 = arith.constant 0 : index
    %c0_3 = arith.constant 0 : index
    %4 = vector.load %arg3[%c0_2, %c0_3] : memref<32x128xbf16, #tpu.memory_space<vmem>>, vector<32x128xbf16>
    %cst = arith.constant dense<0.000000e+00> : vector<16x128xf32>
    %5 = tpu.matmul %3, %4, %cst {dimension_numbers = #tpu.dot_dimension_numbers<[1], [0], [0], [1], [0, 0, 1, 1], [], []>} : vector<16x32xbf16>, vector<32x128xbf16>, vector<16x128xf32> -> vector<16x128xf32>
    %c0_4 = arith.constant 0 : index
    %c0_5 = arith.constant 0 : index
    %6 = vector.load %arg5[%c0_4, %c0_5] : memref<1x128xf32, #tpu.memory_space<vmem>>, vector<1x128xf32>
    %7 = vector.broadcast %6 : vector<1x128xf32> to vector<16x128xf32>
    %8 = arith.addf %5, %7 : vector<16x128xf32>
    %c0_6 = arith.constant 0 : index
    %c0_7 = arith.constant 0 : index
    %9 = vector.load %arg4[%c0_6, %c0_7] : memref<32x128xbf16, #tpu.memory_space<vmem>>, vector<32x128xbf16>
    %cst_8 = arith.constant dense<0.000000e+00> : vector<16x128xf32>
    %10 = tpu.matmul %3, %9, %cst_8 {dimension_numbers = #tpu.dot_dimension_numbers<[1], [0], [0], [1], [0, 0, 1, 1], [], []>} : vector<16x32xbf16>, vector<32x128xbf16>, vector<16x128xf32> -> vector<16x128xf32>
    %c0_9 = arith.constant 0 : index
    %c0_10 = arith.constant 0 : index
    %11 = vector.load %arg6[%c0_9, %c0_10] : memref<1x128xf32, #tpu.memory_space<vmem>>, vector<1x128xf32>
    %12 = vector.broadcast %11 : vector<1x128xf32> to vector<16x128xf32>
    %13 = arith.addf %10, %12 : vector<16x128xf32>
    %cst_11 = arith.constant 5.000000e-01 : f32
    %14 = vector.broadcast %cst_11 : f32 to vector<16x128xf32>
    %15 = arith.mulf %14, %13 : vector<16x128xf32>
    %cst_12 = arith.constant 0.707106769 : f32
    %16 = vector.broadcast %cst_12 : f32 to vector<16x128xf32>
    %17 = arith.mulf %13, %16 : vector<16x128xf32>
    %18 = math.erf %17 : vector<16x128xf32>
    %cst_13 = arith.constant 1.000000e+00 : f32
    %19 = vector.broadcast %cst_13 : f32 to vector<16x128xf32>
    %20 = arith.addf %19, %18 : vector<16x128xf32>
    %21 = arith.mulf %15, %20 : vector<16x128xf32>
    %22 = arith.mulf %8, %21 : vector<16x128xf32>
    %c0_14 = arith.constant 0 : index
    %c0_15 = arith.constant 0 : index
    %23 = vector.load %arg13[%c0_14, %c0_15] : memref<16x32xf32, #tpu.memory_space<vmem>>, vector<16x32xf32>
    %24 = arith.truncf %22 : vector<16x128xf32> to vector<16x128xbf16>
    %c0_16 = arith.constant 0 : index
    %c0_17 = arith.constant 0 : index
    %25 = vector.load %arg7[%c0_16, %c0_17] : memref<128x32xbf16, #tpu.memory_space<vmem>>, vector<128x32xbf16>
    %cst_18 = arith.constant dense<0.000000e+00> : vector<16x32xf32>
    %26 = tpu.matmul %24, %25, %cst_18 {dimension_numbers = #tpu.dot_dimension_numbers<[1], [0], [0], [1], [0, 0, 1, 1], [], []>} : vector<16x128xbf16>, vector<128x32xbf16>, vector<16x32xf32> -> vector<16x32xf32>
    %27 = arith.addf %23, %26 : vector<16x32xf32>
    %c0_19 = arith.constant 0 : index
    %c0_20 = arith.constant 0 : index
    %28 = vector.load %arg13[%c0_19, %c0_20] : memref<16x32xf32, #tpu.memory_space<vmem>>, vector<16x32xf32>
    tpu.vector_store %arg13[%c0_19, %c0_20], %27 {strides = array<i32>} : memref<16x32xf32, #tpu.memory_space<vmem>>, vector<16x32xf32>,
    %c0_i32_21 = arith.constant 0 : i32
    %29 = arith.cmpi eq, %arg1, %c0_i32_21 : i32
    %30 = arith.extui %29 : i1 to i32
    %c0_i32_22 = arith.constant 0 : i32
    %31 = arith.cmpi ne, %30, %c0_i32_22 : i32
    scf.if %31 {
      %c0_23 = arith.constant 0 : index
      %c0_24 = arith.constant 0 : index
      %32 = vector.load %arg13[%c0_23, %c0_24] : memref<16x32xf32, #tpu.memory_space<vmem>>, vector<16x32xf32>
      %c0_25 = arith.constant 0 : index
      %c0_26 = arith.constant 0 : index
      %33 = vector.load %arg8[%c0_25, %c0_26] : memref<1x32xf32, #tpu.memory_space<vmem>>, vector<1x32xf32>
      %34 = vector.broadcast %33 : vector<1x32xf32> to vector<16x32xf32>
      %35 = arith.addf %32, %34 : vector<16x32xf32>
      %c0_27 = arith.constant 0 : index
      %c0_28 = arith.constant 0 : index
      %36 = vector.load %arg11[%c0_27, %c0_28] : memref<16x32xf32, #tpu.memory_space<vmem>>, vector<16x32xf32>
      tpu.vector_store %arg11[%c0_27, %c0_28], %35 {strides = array<i32>} : memref<16x32xf32, #tpu.memory_space<vmem>>, vector<16x32xf32>,
    } else {
    }
    return
  }
  func.func @transform_0(%arg0: i32, %arg1: i32) -> (i32, i32) {
    %c0_i32 = arith.constant 0 : i32
    %c0_i32_0 = arith.constant 0 : i32
    return %arg0, %c0_i32 : i32, i32
  }
  func.func @transform_1(%arg0: i32, %arg1: i32) -> (i32, i32) {
    %c0_i32 = arith.constant 0 : i32
    %c0_i32_0 = arith.constant 0 : i32
    return %c0_i32, %arg1 : i32, i32
  }
  func.func @transform_2(%arg0: i32, %arg1: i32) -> (i32, i32) {
    %c0_i32 = arith.constant 0 : i32
    %c0_i32_0 = arith.constant 0 : i32
    return %c0_i32, %arg1 : i32, i32
  }
  func.func @transform_3(%arg0: i32, %arg1: i32) -> (i32, i32) {
    %c0_i32 = arith.constant 0 : i32
    %c0_i32_0 = arith.constant 0 : i32
    return %c0_i32, %arg1 : i32, i32
  }
  func.func @transform_4(%arg0: i32, %arg1: i32) -> (i32, i32) {
    %c0_i32 = arith.constant 0 : i32
    %c0_i32_0 = arith.constant 0 : i32
    return %c0_i32, %arg1 : i32, i32
  }
  func.func @transform_5(%arg0: i32, %arg1: i32) -> (i32, i32) {
    %c0_i32 = arith.constant 0 : i32
    %c0_i32_0 = arith.constant 0 : i32
    return %arg1, %c0_i32 : i32, i32
  }
  func.func @transform_6(%arg0: i32, %arg1: i32) -> (i32, i32) {
    %c0_i32 = arith.constant 0 : i32
    %c0_i32_0 = arith.constant 0 : i32
    %c0_i32_1 = arith.constant 0 : i32
    return %c0_i32, %c0_i32_0 : i32, i32
  }
  func.func @transform_7(%arg0: i32, %arg1: i32) -> (i32, i32) {
    %c0_i32 = arith.constant 0 : i32
    %c0_i32_0 = arith.constant 0 : i32
    %c0_i32_1 = arith.constant 0 : i32
    return %c0_i32, %c0_i32_0 : i32, i32
  }
  func.func @transform_8(%arg0: i32, %arg1: i32) -> (i32, i32) {
    %c0_i32 = arith.constant 0 : i32
    %c0_i32_0 = arith.constant 0 : i32
    %c0_i32_1 = arith.constant 0 : i32
    return %c0_i32, %c0_i32_0 : i32, i32
  }
  func.func @transform_9(%arg0: i32, %arg1: i32) -> (i32, i32) {
    %c0_i32 = arith.constant 0 : i32
    %c0_i32_0 = arith.constant 0 : i32
    return %arg0, %c0_i32 : i32, i32
  }
}

module attributes {stable_mosaic.version = 11 : i64} {
  func.func @prenorm_ffn_kernel(%arg0: i32, %arg1: i32, %arg2: memref<16x32xf32, #tpu.memory_space<vmem>>, %arg3: memref<32x128xbf16, #tpu.memory_space<vmem>>, %arg4: memref<32x128xbf16, #tpu.memory_space<vmem>>, %arg5: memref<1x128xf32, #tpu.memory_space<vmem>>, %arg6: memref<1x128xf32, #tpu.memory_space<vmem>>, %arg7: memref<128x32xbf16, #tpu.memory_space<vmem>>, %arg8: memref<1x32xf32, #tpu.memory_space<vmem>>, %arg9: memref<1x32xf32, #tpu.memory_space<vmem>>, %arg10: memref<1x32xf32, #tpu.memory_space<vmem>>, %arg11: memref<16x32xf32, #tpu.memory_space<vmem>>, %arg12: memref<16x32xbf16, #tpu.memory_space<vmem>>, %arg13: memref<16x32xf32, #tpu.memory_space<vmem>>) attributes {dimension_semantics = [#tpu.dimension_semantics<parallel>, #tpu.dimension_semantics<arbitrary>], iteration_bounds = array<i64: 1, 1>, scalar_prefetch = 0 : i64, scratch_operands = 2 : i64, tpu.core_type = #tpu.core_type<tc>, window_params = [{transform_indices = @transform_0, window_bounds = array<i64: 16, 32>}, {transform_indices = @transform_1, window_bounds = array<i64: 32, 128>}, {transform_indices = @transform_2, window_bounds = array<i64: 32, 128>}, {transform_indices = @transform_3, window_bounds = array<i64: 1, 128>}, {transform_indices = @transform_4, window_bounds = array<i64: 1, 128>}, {transform_indices = @transform_5, window_bounds = array<i64: 128, 32>}, {pipeline_mode = #tpu.pipeline_mode<synchronous>, transform_indices = @transform_6, window_bounds = array<i64: 1, 32>}, {pipeline_mode = #tpu.pipeline_mode<synchronous>, transform_indices = @transform_7, window_bounds = array<i64: 1, 32>}, {pipeline_mode = #tpu.pipeline_mode<synchronous>, transform_indices = @transform_8, window_bounds = array<i64: 1, 32>}, {transform_indices = @transform_9, window_bounds = array<i64: 16, 32>}]} {
    %c0_i32 = arith.constant 0 : i32
    %0 = arith.cmpi eq, %arg1, %c0_i32 : i32
    %1 = arith.extui %0 : i1 to i32
    %c0_i32_0 = arith.constant 0 : i32
    %2 = arith.cmpi ne, %1, %c0_i32_0 : i32
    scf.if %2 {
      %c0_23 = arith.constant 0 : index
      %c0_24 = arith.constant 0 : index
      %32 = vector.load %arg2[%c0_23, %c0_24] : memref<16x32xf32, #tpu.memory_space<vmem>>, vector<16x32xf32>
      %cst_25 = arith.constant dense<0.000000e+00> : vector<16xf32>
      %33 = vector.multi_reduction <add>, %32, %cst_25 [1] : vector<16x32xf32> to vector<16xf32>
      %34 = vector.shape_cast %33 : vector<16xf32> to vector<16x1xf32>
      %cst_26 = arith.constant 3.200000e+01 : f32
      %35 = vector.broadcast %cst_26 : f32 to vector<16x1xf32>
      %36 = arith.divf %34, %35 : vector<16x1xf32>
      %37 = vector.broadcast %36 : vector<16x1xf32> to vector<16x32xf32>
      %38 = arith.subf %32, %37 : vector<16x32xf32>
      %39 = arith.mulf %38, %38 : vector<16x32xf32>
      %cst_27 = arith.constant dense<0.000000e+00> : vector<16xf32>
      %40 = vector.multi_reduction <add>, %39, %cst_27 [1] : vector<16x32xf32> to vector<16xf32>
      %41 = vector.shape_cast %40 : vector<16xf32> to vector<16x1xf32>
      %cst_28 = arith.constant 3.200000e+01 : f32
      %42 = vector.broadcast %cst_28 : f32 to vector<16x1xf32>
      %43 = arith.divf %41, %42 : vector<16x1xf32>
      %cst_29 = arith.constant 9.99999974E-6 : f32
      %44 = vector.broadcast %cst_29 : f32 to vector<16x1xf32>
      %45 = arith.addf %43, %44 : vector<16x1xf32>
      %46 = math.rsqrt %45 : vector<16x1xf32>
      %47 = vector.broadcast %46 : vector<16x1xf32> to vector<16x32xf32>
      %48 = arith.mulf %38, %47 : vector<16x32xf32>
      %c0_30 = arith.constant 0 : index
      %c0_31 = arith.constant 0 : index
      %49 = vector.load %arg9[%c0_30, %c0_31] : memref<1x32xf32, #tpu.memory_space<vmem>>, vector<1x32xf32>
      %50 = vector.broadcast %49 : vector<1x32xf32> to vector<16x32xf32>
      %51 = arith.mulf %48, %50 : vector<16x32xf32>
      %c0_32 = arith.constant 0 : index
      %c0_33 = arith.constant 0 : index
      %52 = vector.load %arg10[%c0_32, %c0_33] : memref<1x32xf32, #tpu.memory_space<vmem>>, vector<1x32xf32>
      %53 = vector.broadcast %52 : vector<1x32xf32> to vector<16x32xf32>
      %54 = arith.addf %51, %53 : vector<16x32xf32>
      %55 = arith.truncf %54 : vector<16x32xf32> to vector<16x32xbf16>
      %c0_34 = arith.constant 0 : index
      %c0_35 = arith.constant 0 : index
      %56 = vector.load %arg12[%c0_34, %c0_35] : memref<16x32xbf16, #tpu.memory_space<vmem>>, vector<16x32xbf16>
      tpu.vector_store %arg12[%c0_34, %c0_35], %55 {strides = array<i32>} : memref<16x32xbf16, #tpu.memory_space<vmem>>, vector<16x32xbf16>,
      %cst_36 = arith.constant 0.000000e+00 : f32
      %57 = vector.broadcast %cst_36 : f32 to vector<16x32xf32>
      %c0_37 = arith.constant 0 : index
      %c0_38 = arith.constant 0 : index
      %58 = vector.load %arg13[%c0_37, %c0_38] : memref<16x32xf32, #tpu.memory_space<vmem>>, vector<16x32xf32>
      tpu.vector_store %arg13[%c0_37, %c0_38], %57 {strides = array<i32>} : memref<16x32xf32, #tpu.memory_space<vmem>>, vector<16x32xf32>,
    } else {
    }
    %c0 = arith.constant 0 : index
    %c0_1 = arith.constant 0 : index
    %3 = vector.load %arg12[%c0, %c0_1] : memref<16x32xbf16, #tpu.memory_space<vmem>>, vector<16x32xbf16>
    %c0_2 = arith.constant 0 : index
    %c0_3 = arith.constant 0 : index
    %4 = vector.load %arg3[%c0_2, %c0_3] : memref<32x128xbf16, #tpu.memory_space<vmem>>, vector<32x128xbf16>
    %cst = arith.constant dense<0.000000e+00> : vector<16x128xf32>
    %5 = tpu.matmul %3, %4, %cst {dimension_numbers = #tpu.dot_dimension_numbers<[1], [0], [0], [1], [0, 0, 1, 1], [], []>} : vector<16x32xbf16>, vector<32x128xbf16>, vector<16x128xf32> -> vector<16x128xf32>
    %c0_4 = arith.constant 0 : index
    %c0_5 = arith.constant 0 : index
    %6 = vector.load %arg5[%c0_4, %c0_5] : memref<1x128xf32, #tpu.memory_space<vmem>>, vector<1x128xf32>
    %7 = vector.broadcast %6 : vector<1x128xf32> to vector<16x128xf32>
    %8 = arith.addf %5, %7 : vector<16x128xf32>
    %c0_6 = arith.constant 0 : index
    %c0_7 = arith.constant 0 : index
    %9 = vector.load %arg4[%c0_6, %c0_7] : memref<32x128xbf16, #tpu.memory_space<vmem>>, vector<32x128xbf16>
    %cst_8 = arith.constant dense<0.000000e+00> : vector<16x128xf32>
    %10 = tpu.matmul %3, %9, %cst_8 {dimension_numbers = #tpu.dot_dimension_numbers<[1], [0], [0], [1], [0, 0, 1, 1], [], []>} : vector<16x32xbf16>, vector<32x128xbf16>, vector<16x128xf32> -> vector<16x128xf32>
    %c0_9 = arith.constant 0 : index
    %c0_10 = arith.constant 0 : index
    %11 = vector.load %arg6[%c0_9, %c0_10] : memref<1x128xf32, #tpu.memory_space<vmem>>, vector<1x128xf32>
    %12 = vector.broadcast %11 : vector<1x128xf32> to vector<16x128xf32>
    %13 = arith.addf %10, %12 : vector<16x128xf32>
    %cst_11 = arith.constant 5.000000e-01 : f32
    %14 = vector.broadcast %cst_11 : f32 to vector<16x128xf32>
    %15 = arith.mulf %14, %13 : vector<16x128xf32>
    %cst_12 = arith.constant 0.707106769 : f32
    %16 = vector.broadcast %cst_12 : f32 to vector<16x128xf32>
    %17 = arith.mulf %13, %16 : vector<16x128xf32>
    %18 = math.erf %17 : vector<16x128xf32>
    %cst_13 = arith.constant 1.000000e+00 : f32
    %19 = vector.broadcast %cst_13 : f32 to vector<16x128xf32>
    %20 = arith.addf %19, %18 : vector<16x128xf32>
    %21 = arith.mulf %15, %20 : vector<16x128xf32>
    %22 = arith.mulf %8, %21 : vector<16x128xf32>
    %c0_14 = arith.constant 0 : index
    %c0_15 = arith.constant 0 : index
    %23 = vector.load %arg13[%c0_14, %c0_15] : memref<16x32xf32, #tpu.memory_space<vmem>>, vector<16x32xf32>
    %24 = arith.truncf %22 : vector<16x128xf32> to vector<16x128xbf16>
    %c0_16 = arith.constant 0 : index
    %c0_17 = arith.constant 0 : index
    %25 = vector.load %arg7[%c0_16, %c0_17] : memref<128x32xbf16, #tpu.memory_space<vmem>>, vector<128x32xbf16>
    %cst_18 = arith.constant dense<0.000000e+00> : vector<16x32xf32>
    %26 = tpu.matmul %24, %25, %cst_18 {dimension_numbers = #tpu.dot_dimension_numbers<[1], [0], [0], [1], [0, 0, 1, 1], [], []>} : vector<16x128xbf16>, vector<128x32xbf16>, vector<16x32xf32> -> vector<16x32xf32>
    %27 = arith.addf %23, %26 : vector<16x32xf32>
    %c0_19 = arith.constant 0 : index
    %c0_20 = arith.constant 0 : index
    %28 = vector.load %arg13[%c0_19, %c0_20] : memref<16x32xf32, #tpu.memory_space<vmem>>, vector<16x32xf32>
    tpu.vector_store %arg13[%c0_19, %c0_20], %27 {strides = array<i32>} : memref<16x32xf32, #tpu.memory_space<vmem>>, vector<16x32xf32>,
    %c0_i32_21 = arith.constant 0 : i32
    %29 = arith.cmpi eq, %arg1, %c0_i32_21 : i32
    %30 = arith.extui %29 : i1 to i32
    %c0_i32_22 = arith.constant 0 : i32
    %31 = arith.cmpi ne, %30, %c0_i32_22 : i32
    scf.if %31 {
      %c0_23 = arith.constant 0 : index
      %c0_24 = arith.constant 0 : index
      %32 = vector.load %arg13[%c0_23, %c0_24] : memref<16x32xf32, #tpu.memory_space<vmem>>, vector<16x32xf32>
      %c0_25 = arith.constant 0 : index
      %c0_26 = arith.constant 0 : index
      %33 = vector.load %arg8[%c0_25, %c0_26] : memref<1x32xf32, #tpu.memory_space<vmem>>, vector<1x32xf32>
      %34 = vector.broadcast %33 : vector<1x32xf32> to vector<16x32xf32>
      %35 = arith.addf %32, %34 : vector<16x32xf32>
      %c0_27 = arith.constant 0 : index
      %c0_28 = arith.constant 0 : index
      %36 = vector.load %arg11[%c0_27, %c0_28] : memref<16x32xf32, #tpu.memory_space<vmem>>, vector<16x32xf32>
      tpu.vector_store %arg11[%c0_27, %c0_28], %35 {strides = array<i32>} : memref<16x32xf32, #tpu.memory_space<vmem>>, vector<16x32xf32>,
    } else {
    }
    return
  }
  func.func @transform_0(%arg0: i32, %arg1: i32) -> (i32, i32) {
    %c0_i32 = arith.constant 0 : i32
    %c0_i32_0 = arith.constant 0 : i32
    return %arg0, %c0_i32 : i32, i32
  }
  func.func @transform_1(%arg0: i32, %arg1: i32) -> (i32, i32) {
    %c0_i32 = arith.constant 0 : i32
    %c0_i32_0 = arith.constant 0 : i32
    return %c0_i32, %arg1 : i32, i32
  }
  func.func @transform_2(%arg0: i32, %arg1: i32) -> (i32, i32) {
    %c0_i32 = arith.constant 0 : i32
    %c0_i32_0 = arith.constant 0 : i32
    return %c0_i32, %arg1 : i32, i32
  }
  func.func @transform_3(%arg0: i32, %arg1: i32) -> (i32, i32) {
    %c0_i32 = arith.constant 0 : i32
    %c0_i32_0 = arith.constant 0 : i32
    return %c0_i32, %arg1 : i32, i32
  }
  func.func @transform_4(%arg0: i32, %arg1: i32) -> (i32, i32) {
    %c0_i32 = arith.constant 0 : i32
    %c0_i32_0 = arith.constant 0 : i32
    return %c0_i32, %arg1 : i32, i32
  }
  func.func @transform_5(%arg0: i32, %arg1: i32) -> (i32, i32) {
    %c0_i32 = arith.constant 0 : i32
    %c0_i32_0 = arith.constant 0 : i32
    return %arg1, %c0_i32 : i32, i32
  }
  func.func @transform_6(%arg0: i32, %arg1: i32) -> (i32, i32) {
    %c0_i32 = arith.constant 0 : i32
    %c0_i32_0 = arith.constant 0 : i32
    %c0_i32_1 = arith.constant 0 : i32
    return %c0_i32, %c0_i32_0 : i32, i32
  }
  func.func @transform_7(%arg0: i32, %arg1: i32) -> (i32, i32) {
    %c0_i32 = arith.constant 0 : i32
    %c0_i32_0 = arith.constant 0 : i32
    %c0_i32_1 = arith.constant 0 : i32
    return %c0_i32, %c0_i32_0 : i32, i32
  }
  func.func @transform_8(%arg0: i32, %arg1: i32) -> (i32, i32) {
    %c0_i32 = arith.constant 0 : i32
    %c0_i32_0 = arith.constant 0 : i32
    %c0_i32_1 = arith.constant 0 : i32
    return %c0_i32, %c0_i32_0 : i32, i32
  }
  func.func @transform_9(%arg0: i32, %arg1: i32) -> (i32, i32) {
    %c0_i32 = arith.constant 0 : i32
    %c0_i32_0 = arith.constant 0 : i32
    return %arg0, %c0_i32 : i32, i32
  }
}

</mosaic_0001>

<llo_original>
// kernel: tpu_custom_call.1
$region0: #{tpu_custom_call.1}
  #allocation0 [shape = 'u32[]', space=smem, size = 0x4, offset = 0x4, fixed_abs, tag = 'smem constant byte address 0x4 - core index']
  #allocation1 [shape = 'u32[144,128]{1,0:T(1,128)}', space=vmem, size = 0x12000, scoped, tag = 'internal scratch']
  #allocation2 [shape = 'bf16[16,32]{1,0:T(16,128)(2,1)}', space=vmem, size = 0x1000, scoped, tag = 'scratch operand']
  #allocation3 [shape = 'f32[16,32]{1,0:T(8,128)}', space=vmem, size = 0x2000, scoped, tag = 'scratch operand']
  %s0 = inlined_call_operand.vmem [shape: f32[16,32], index: 0, kind: input, shape index: {}]
  %s1 = inlined_call_operand.vmem [shape: bf16[32,128], index: 1, kind: input, shape index: {}]
  %s2 = inlined_call_operand.vmem [shape: bf16[32,128], index: 2, kind: input, shape index: {}]
  %s3 = inlined_call_operand.vmem [shape: f32[1,128], index: 3, kind: input, shape index: {}]
  %s4 = inlined_call_operand.vmem [shape: f32[1,128], index: 4, kind: input, shape index: {}]
  %s5 = inlined_call_operand.vmem [shape: bf16[128,32], index: 5, kind: input, shape index: {}]
  %s6 = inlined_call_operand.vmem [shape: f32[1,32], index: 6, kind: input, shape index: {}]
  %s7 = inlined_call_operand.vmem [shape: f32[1,32], index: 7, kind: input, shape index: {}]
  %s8 = inlined_call_operand.vmem [shape: f32[1,32], index: 8, kind: input, shape index: {}]
  %s9 = inlined_call_operand.hbm [shape: f32[16,32], index: 9, kind: output, shape index: {}]
  %s10 = sld [smem:[#allocation0]]
  $region54: #{tpu_custom_call.1} parent=0
    _
  %s12 = ssub.s32 1, %s10
  %s13 = scalar_select 0, %s12, %s10
  $region1: #{tpu_custom_call.1} parent=0
    #allocation4 [shape = 'u8[8192]{0}', space=vmem, size = 0x2000, scoped, tag = 'output window, operand 0, single buffered']
    #allocation5 [shape = 's32[1]{0}', space=sflag, size = 0x4, scoped, tag = 'scoped memory for tpu_custom_call.1']
    %14 = vsyncpa [#allocation5], 0
    // Predicated region
    $region2: #{tpu_custom_call.1} parent=1 // pred_check
      _
    $region3: #{tpu_custom_call.1} parent=1 // pred_check_branch
      %16 = sbr.rel (0) target = $region5
    $region4: #{tpu_custom_call.1} parent=1 // pred_region
      _
    $region5: #{tpu_custom_call.1} parent=1 // pred_fallthru
      _
    // Predicated region
    $region6: #{tpu_custom_call.1} parent=1 // pred_check
      _
    $region7: #{tpu_custom_call.1} parent=1 // pred_check_branch
      %18 = sbr.rel (0) target = $region9
    $region8: #{tpu_custom_call.1} parent=1 // pred_region
      _
    $region9: #{tpu_custom_call.1} parent=1 // pred_fallthru
      _
    // Predicated region
    $region10: #{tpu_custom_call.1} parent=1 // pred_check
      _
    $region11: #{tpu_custom_call.1} parent=1 // pred_check_branch
      %20 = sbr.rel (0) target = $region13
    $region12: #{tpu_custom_call.1} parent=1 // pred_region
      _
    $region13: #{tpu_custom_call.1} parent=1 // pred_fallthru
      _
    // Predicated region
    $region14: #{tpu_custom_call.1} parent=1 // pred_check
      _
    $region15: #{tpu_custom_call.1} parent=1 // pred_check_branch
      %22 = sbr.rel (0) target = $region17
    $region16: #{tpu_custom_call.1} parent=1 // pred_region
      _
    $region17: #{tpu_custom_call.1} parent=1 // pred_fallthru
      _
    // Predicated region
    $region18: #{tpu_custom_call.1} parent=1 // pred_check
      _
    $region19: #{tpu_custom_call.1} parent=1 // pred_check_branch
      %24 = sbr.rel (0) target = $region21
    $region20: #{tpu_custom_call.1} parent=1 // pred_region
      _
    $region21: #{tpu_custom_call.1} parent=1 // pred_fallthru
      _
    // Predicated region
    $region22: #{tpu_custom_call.1} parent=1 // pred_check
      _
    $region23: #{tpu_custom_call.1} parent=1 // pred_check_branch
      %26 = sbr.rel (0) target = $region25
    $region24: #{tpu_custom_call.1} parent=1 // pred_region
      _
    $region25: #{tpu_custom_call.1} parent=1 // pred_fallthru
      _
    // Predicated region
    $region26: #{tpu_custom_call.1} parent=1 // pred_check
      _
    $region27: #{tpu_custom_call.1} parent=1 // pred_check_branch
      %28 = sbr.rel (0) target = $region29
    $region28: #{tpu_custom_call.1} parent=1 // pred_region
      _
    $region29: #{tpu_custom_call.1} parent=1 // pred_fallthru
      _
    // Predicated region
    $region30: #{tpu_custom_call.1} parent=1 // pred_check
      _
    $region31: #{tpu_custom_call.1} parent=1 // pred_check_branch
      %30 = sbr.rel (0) target = $region33
    $region32: #{tpu_custom_call.1} parent=1 // pred_region
      _
    $region33: #{tpu_custom_call.1} parent=1 // pred_fallthru
      _
    // Predicated region
    $region34: #{tpu_custom_call.1} parent=1 // pred_check
      _
    $region35: #{tpu_custom_call.1} parent=1 // pred_check_branch
      %32 = sbr.rel (0) target = $region37
    $region36: #{tpu_custom_call.1} parent=1 // pred_region
      _
    $region37: #{tpu_custom_call.1} parent=1 // pred_fallthru
      _
    %p34 = scmp.eq.s32.totalorder 0, 0
    // Predicated region
    $region38: #{tpu_custom_call.1} parent=1 // pred_check
      %p35 = pneg %p34
    $region39: #{tpu_custom_call.1} parent=1 // pred_check_branch
      %37 = sbr.rel (%p35) target = $region41
    $region40: #{tpu_custom_call.1} parent=1 // pred_region
      %v38 = vld [vmem:[%s0] sm:$0xff]
      %v39 = vld [vmem:[%s0 + $0x8] sm:$0xff]
      %vm40 = vcmask 261120
      %v41 = vsel %vm40, %v38, 0.0
      %42 = vadd.xlane.f32.xlu0 %v41
      %v43 = vpop.xlane.xlu0 %42
      %v44 = vsel %vm40, %v39, 0.0
      %45 = vadd.xlane.f32.xlu0 %v44
      %v46 = vpop.xlane.xlu0 %45
      %v47 = vrcp.pop 32.0
      %v48 = vmul.f32 %v43, %v47
      %v49 = vmul.f32 %v46, %v47
      %v50 = vsub.f32 %v38, %v48
      %v51 = vsub.f32 %v39, %v49
      %v52 = vmul.f32 %v50, %v50
      %v53 = vmul.f32 %v51, %v51
      %v54 = vsel %vm40, %v52, 0.0
      %55 = vadd.xlane.f32.xlu0 %v54
      %v56 = vpop.xlane.xlu0 %55
      %v57 = vsel %vm40, %v53, 0.0
      %58 = vadd.xlane.f32.xlu0 %v57
      %v59 = vpop.xlane.xlu0 %58
      %v60 = vmul.f32 %v56, %v47
      %v61 = vmul.f32 %v59, %v47
      %v62 = vadd.f32 %v60, 1e-05
      %v63 = vadd.f32 %v61, 1e-05
      %v64 = vrsqrt.pop %v62
      %v65 = vrsqrt.pop %v63
      %v66 = vmul.f32 %v50, %v64
      %v67 = vmul.f32 %v51, %v65
      %v68 = vld [vmem:[%s7] sm:$0x1]
      %v70 = vlaneseq
      %v71 = vshrl.u32 %v70, 7
      %v72 = vsub.s32 0, %v71
      %v73 = vrot.slane %v68, %v72
      %v75 = vmul.f32 %v66, %v73
      %v76 = vmul.f32 %v67, %v73
      %v77 = vld [vmem:[%s8] sm:$0x1]
      %v79 = vlaneseq
      %v80 = vshrl.u32 %v79, 7
      %v81 = vsub.s32 0, %v80
      %v82 = vrot.slane %v77, %v81
      %v84 = vadd.f32 %v75, %v82
      %v85 = vadd.f32 %v76, %v82
      %v86 = vpack.c.bf16 %v85, %v84
      %87 = vst.msk [vmem:[#allocation2] sm:$0xff] %vm40, %v86
      %88 = vst.msk [vmem:[#allocation3] sm:$0xff] %vm40, 0.0
      %89 = vst.msk [vmem:[#allocation3 + $0x8] sm:$0xff] %vm40, 0.0
    $region41: #{tpu_custom_call.1} parent=1 // pred_fallthru
      _
    %v90 = vld [vmem:[#allocation2] sm:$0xff]
    %v91 = vld [vmem:[%s1] sm:$0xf]
    %v92 = vld [vmem:[%s1 + $0x4] sm:$0xf]
    %v93 = vld [vmem:[%s1 + $0x8] sm:$0xf]
    %v94 = vld [vmem:[%s1 + $0xc] sm:$0xf]
    %v95 = vld [vmem:[%s3] sm:$0x1]
    %v97 = vlaneseq
    %v98 = vshrl.u32 %v97, 7
    %v99 = vsub.s32 0, %v98
    %v100 = vrot.slane %v95, %v99
    %v106 = vunpack.c.l.b16 %v91
    %v107 = vunpack.c.l.b16 %v92
    %v108 = vunpack.c.l.b16 %v93
    %v109 = vunpack.c.l.b16 %v94
    %v110 = vpack.c.b16 %v107, %v106
    %v111 = vpack.c.b16 %v109, %v108
    %vm114 = vcmask 261120
    %v116 = vsel %vm114, %v90, 0
    %118 = vmatprep.subr.bf16.mxu0 0
    %119 = vmatpush1.bf16.msra.mxu0 %v110
    %120 = vmatprep.subr.bf16.mxu0 0
    %121 = vmatpush1.bf16.msra.mxu0 %v111
    %122 = vmatprep.subr.bf16.mxu0 0
    %123 = vmatpush1.bf16.msra.mxu0 0
    %124 = vmatprep.subr.bf16.mxu0 0
    %125 = vmatpush1.bf16.msra.mxu0 0
    %126 = vmatprep.subr.bf16.mxu0 0
    %127 = vmatpush1.bf16.msra.mxu0 0
    %128 = vmatprep.subr.bf16.mxu0 0
    %129 = vmatpush1.bf16.msra.mxu0 0
    %130 = vmatprep.subr.bf16.mxu0 0
    %131 = vmatpush1.bf16.msra.mxu0 0
    %132 = vmatprep.subr.bf16.mxu0 0
    %133 = vmatpush1.bf16.msra.mxu0 0
    %134 = vmatprep.subr.bf16.mxu0 0
    %135 = vmatpush1.bf16.msra.mxu0 0
    %136 = vmatprep.subr.bf16.mxu0 0
    %137 = vmatpush1.bf16.msra.mxu0 0
    %138 = vmatprep.subr.bf16.mxu0 0
    %139 = vmatpush1.bf16.msra.mxu0 0
    %140 = vmatprep.subr.bf16.mxu0 0
    %141 = vmatpush1.bf16.msra.mxu0 0
    %142 = vmatprep.subr.bf16.mxu0 0
    %143 = vmatpush1.bf16.msra.mxu0 0
    %144 = vmatprep.subr.bf16.mxu0 0
    %145 = vmatpush1.bf16.msra.mxu0 0
    %146 = vmatprep.subr.bf16.mxu0 0
    %147 = vmatpush1.bf16.msra.mxu0 0
    %148 = vmatprep.subr.bf16.mxu0 0
    %149 = vmatpush1.bf16.msra.mxu0 0
    %150 = vmatprep.mubr.bf16.mxu0 0
    %151 = vmatmul.mubr.bf16.gmra.mrb[0].mxu0 %v116
    %v152 = vpop.f32.mrb[0].mxu0
    %v153 = vadd.f32 %v100, %v152
    %v154 = vpop.f32.mrb[0].mxu0
    %v155 = vpop.f32.mrb[0].mxu0
    %v156 = vadd.f32 %v100, %v155
    %v157 = vpop.f32.mrb[0].mxu0
    %158 = vdwg.mxu0
    %v159 = vld [vmem:[%s2] sm:$0xf]
    %v160 = vld [vmem:[%s2 + $0x4] sm:$0xf]
    %v161 = vld [vmem:[%s2 + $0x8] sm:$0xf]
    %v162 = vld [vmem:[%s2 + $0xc] sm:$0xf]
    %v163 = vld [vmem:[%s4] sm:$0x1]
    %v165 = vlaneseq
    %v166 = vshrl.u32 %v165, 7
    %v167 = vsub.s32 0, %v166
    %v168 = vrot.slane %v163, %v167
    %v174 = vunpack.c.l.b16 %v159
    %v175 = vunpack.c.l.b16 %v160
    %v176 = vunpack.c.l.b16 %v161
    %v177 = vunpack.c.l.b16 %v162
    %v178 = vpack.c.b16 %v175, %v174
    %v179 = vpack.c.b16 %v177, %v176
    %182 = vmatprep.subr.bf16.mxu0 0
    %183 = vmatpush1.bf16.msra.mxu0 %v178
    %184 = vmatprep.subr.bf16.mxu0 0
    %185 = vmatpush1.bf16.msra.mxu0 %v179
    %186 = vmatprep.subr.bf16.mxu0 0
    %187 = vmatpush1.bf16.msra.mxu0 0
    %188 = vmatprep.subr.bf16.mxu0 0
    %189 = vmatpush1.bf16.msra.mxu0 0
    %190 = vmatprep.subr.bf16.mxu0 0
    %191 = vmatpush1.bf16.msra.mxu0 0
    %192 = vmatprep.subr.bf16.mxu0 0
    %193 = vmatpush1.bf16.msra.mxu0 0
    %194 = vmatprep.subr.bf16.mxu0 0
    %195 = vmatpush1.bf16.msra.mxu0 0
    %196 = vmatprep.subr.bf16.mxu0 0
    %197 = vmatpush1.bf16.msra.mxu0 0
    %198 = vmatprep.subr.bf16.mxu0 0
    %199 = vmatpush1.bf16.msra.mxu0 0
    %200 = vmatprep.subr.bf16.mxu0 0
    %201 = vmatpush1.bf16.msra.mxu0 0
    %202 = vmatprep.subr.bf16.mxu0 0
    %203 = vmatpush1.bf16.msra.mxu0 0
    %204 = vmatprep.subr.bf16.mxu0 0
    %205 = vmatpush1.bf16.msra.mxu0 0
    %206 = vmatprep.subr.bf16.mxu0 0
    %207 = vmatpush1.bf16.msra.mxu0 0
    %208 = vmatprep.subr.bf16.mxu0 0
    %209 = vmatpush1.bf16.msra.mxu0 0
    %210 = vmatprep.subr.bf16.mxu0 0
    %211 = vmatpush1.bf16.msra.mxu0 0
    %212 = vmatprep.subr.bf16.mxu0 0
    %213 = vmatpush1.bf16.msra.mxu0 0
    %214 = vmatprep.mubr.bf16.mxu0 0
    %215 = vmatmul.mubr.bf16.gmra.mrb[0].mxu0 %v116
    %v216 = vpop.f32.mrb[0].mxu0
    %v217 = vadd.f32 %v168, %v216
    %v218 = vpop.f32.mrb[0].mxu0
    %v219 = vpop.f32.mrb[0].mxu0
    %v220 = vadd.f32 %v168, %v219
    %v221 = vpop.f32.mrb[0].mxu0
    %222 = vdwg.mxu0
    %v223 = vmul.f32 %v217, 0.5
    %v224 = vmul.f32 %v220, 0.5
    %v225 = vmul.f32 %v217, 0.70710677
    %v226 = vmul.f32 %v220, 0.70710677
    %v227 = verf.f32.pop %v225
    %v228 = verf.f32.pop %v226
    %v229 = vadd.f32 %v227, 1.0
    %v230 = vadd.f32 %v228, 1.0
    %v231 = vmul.f32 %v223, %v229
    %v232 = vmul.f32 %v224, %v230
    %v233 = vmul.f32 %v153, %v231
    %v234 = vmul.f32 %v156, %v232
    %v235 = vld [vmem:[#allocation3] sm:$0xff]
    %v236 = vld [vmem:[#allocation3 + $0x8] sm:$0xff]
    %v237 = vpack.c.bf16 %v234, %v233
    %v238 = vld [vmem:[%s5] sm:$0xf]
    %v239 = vld [vmem:[%s5 + $0x4] sm:$0xf]
    %v240 = vld [vmem:[%s5 + $0x8] sm:$0xf]
    %v241 = vld [vmem:[%s5 + $0xc] sm:$0xf]
    %v242 = vld [vmem:[%s5 + $0x10] sm:$0xf]
    %v243 = vld [vmem:[%s5 + $0x14] sm:$0xf]
    %v244 = vld [vmem:[%s5 + $0x18] sm:$0xf]
    %v245 = vld [vmem:[%s5 + $0x1c] sm:$0xf]
    %v246 = vld [vmem:[%s5 + $0x20] sm:$0xf]
    %v247 = vld [vmem:[%s5 + $0x24] sm:$0xf]
    %v248 = vld [vmem:[%s5 + $0x28] sm:$0xf]
    %v249 = vld [vmem:[%s5 + $0x2c] sm:$0xf]
    %v250 = vld [vmem:[%s5 + $0x30] sm:$0xf]
    %v251 = vld [vmem:[%s5 + $0x34] sm:$0xf]
    %v252 = vld [vmem:[%s5 + $0x38] sm:$0xf]
    %v253 = vld [vmem:[%s5 + $0x3c] sm:$0xf]
    %v270 = vunpack.c.l.b16 %v238
    %v271 = vunpack.c.l.b16 %v239
    %v272 = vunpack.c.l.b16 %v240
    %v273 = vunpack.c.l.b16 %v241
    %v274 = vunpack.c.l.b16 %v242
    %v275 = vunpack.c.l.b16 %v243
    %v276 = vunpack.c.l.b16 %v244
    %v277 = vunpack.c.l.b16 %v245
    %v278 = vunpack.c.l.b16 %v246
    %v279 = vunpack.c.l.b16 %v247
    %v280 = vunpack.c.l.b16 %v248
    %v281 = vunpack.c.l.b16 %v249
    %v282 = vunpack.c.l.b16 %v250
    %v283 = vunpack.c.l.b16 %v251
    %v284 = vunpack.c.l.b16 %v252
    %v285 = vunpack.c.l.b16 %v253
    %v286 = vpack.c.b16 %v271, %v270
    %v287 = vpack.c.b16 %v273, %v272
    %v288 = vpack.c.b16 %v275, %v274
    %v289 = vpack.c.b16 %v277, %v276
    %v290 = vpack.c.b16 %v279, %v278
    %v291 = vpack.c.b16 %v281, %v280
    %v292 = vpack.c.b16 %v283, %v282
    %v293 = vpack.c.b16 %v285, %v284
    %302 = vmatprep.subr.bf16.mxu0 0
    %303 = vmatpush1.bf16.msra.mxu0 %v286
    %304 = vmatprep.subr.bf16.mxu0 0
    %305 = vmatpush1.bf16.msra.mxu0 %v287
    %306 = vmatprep.subr.bf16.mxu0 0
    %307 = vmatpush1.bf16.msra.mxu0 %v288
    %308 = vmatprep.subr.bf16.mxu0 0
    %309 = vmatpush1.bf16.msra.mxu0 %v289
    %310 = vmatprep.subr.bf16.mxu0 0
    %311 = vmatpush1.bf16.msra.mxu0 %v290
    %312 = vmatprep.subr.bf16.mxu0 0
    %313 = vmatpush1.bf16.msra.mxu0 %v291
    %314 = vmatprep.subr.bf16.mxu0 0
    %315 = vmatpush1.bf16.msra.mxu0 %v292
    %316 = vmatprep.subr.bf16.mxu0 0
    %317 = vmatpush1.bf16.msra.mxu0 %v293
    %318 = vmatprep.subr.bf16.mxu0 0
    %319 = vmatpush1.bf16.msra.mxu0 0
    %320 = vmatprep.subr.bf16.mxu0 0
    %321 = vmatpush1.bf16.msra.mxu0 0
    %322 = vmatprep.subr.bf16.mxu0 0
    %323 = vmatpush1.bf16.msra.mxu0 0
    %324 = vmatprep.subr.bf16.mxu0 0
    %325 = vmatpush1.bf16.msra.mxu0 0
    %326 = vmatprep.subr.bf16.mxu0 0
    %327 = vmatpush1.bf16.msra.mxu0 0
    %328 = vmatprep.subr.bf16.mxu0 0
    %329 = vmatpush1.bf16.msra.mxu0 0
    %330 = vmatprep.subr.bf16.mxu0 0
    %331 = vmatpush1.bf16.msra.mxu0 0
    %332 = vmatprep.subr.bf16.mxu0 0
    %333 = vmatpush1.bf16.msra.mxu0 0
    %334 = vmatprep.mubr.bf16.mxu0 0
    %335 = vmatmul.mubr.bf16.gmra.mrb[0].mxu0 %v237
    %v336 = vpop.f32.mrb[0].mxu0
    %v337 = vadd.f32 0.0, %v336
    %v338 = vpop.f32.mrb[0].mxu0
    %v339 = vpop.f32.mrb[0].mxu0
    %v340 = vadd.f32 0.0, %v339
    %v341 = vpop.f32.mrb[0].mxu0
    %342 = vdwg.mxu0
    %v343 = vadd.f32 %v235, %v337
    %v344 = vadd.f32 %v236, %v340
    %345 = vst.msk [vmem:[#allocation3] sm:$0xff] %vm114, %v343
    %346 = vst.msk [vmem:[#allocation3 + $0x8] sm:$0xff] %vm114, %v344
    // Predicated region
    $region42: #{tpu_custom_call.1} parent=1 // pred_check
      %p347 = pneg %p34
    $region43: #{tpu_custom_call.1} parent=1 // pred_check_branch
      %349 = sbr.rel (%p347) target = $region45
    $region44: #{tpu_custom_call.1} parent=1 // pred_region
      %v350 = vld [vmem:[#allocation3] sm:$0xff]
      %v351 = vld [vmem:[#allocation3 + $0x8] sm:$0xff]
      %v352 = vld [vmem:[%s6] sm:$0x1]
      %v354 = vlaneseq
      %v355 = vshrl.u32 %v354, 7
      %v356 = vsub.s32 0, %v355
      %v357 = vrot.slane %v352, %v356
      %v359 = vadd.f32 %v350, %v357
      %v360 = vadd.f32 %v351, %v357
      %361 = vst.msk [vmem:[#allocation4] sm:$0xff] %vm114, %v359
      %362 = vst.msk [vmem:[#allocation4 + $0x8] sm:$0xff] %vm114, %v360
    $region45: #{tpu_custom_call.1} parent=1 // pred_fallthru
      _
    // Predicated region
    $region46: #{tpu_custom_call.1} parent=1 // pred_check
      _
    $region47: #{tpu_custom_call.1} parent=1 // pred_check_branch
      %364 = sbr.rel (0) target = $region49
    $region48: #{tpu_custom_call.1} parent=1 // pred_region
      %s366 = ssub.s32 256, 256
      %367 = vsyncadd [#allocation5], %s366
      %s368 = sshll.u32 [#allocation4], 4
      %s369 = int_to_ptr.vmem [resolvable:$true] %s368
      %374 = dma.vmem_to_hbm [thread:$0]  %s369, 256, %s9, [#allocation5], 128, 128, 8
    $region49: #{tpu_custom_call.1} parent=1 // pred_fallthru
      _
    // Predicated region
    $region50: #{tpu_custom_call.1} parent=1 // pred_check
      _
    $region51: #{tpu_custom_call.1} parent=1 // pred_check_branch
      %376 = sbr.rel (0) target = $region53
    $region52: #{tpu_custom_call.1} parent=1 // pred_region
      %377 = dma.done [#allocation5], 256
    $region53: #{tpu_custom_call.1} parent=1 // pred_fallthru
      _
    %378 = vsyncpa [#allocation5], 1

// kernel: tpu_custom_call.1
$region0: #{tpu_custom_call.1}
  #allocation0 [shape = 'u32[]', space=smem, size = 0x4, offset = 0x4, fixed_abs, tag = 'smem constant byte address 0x4 - core index']
  #allocation1 [shape = 'u32[144,128]{1,0:T(1,128)}', space=vmem, size = 0x12000, scoped, tag = 'internal scratch']
  #allocation2 [shape = 'bf16[16,32]{1,0:T(16,128)(2,1)}', space=vmem, size = 0x1000, scoped, tag = 'scratch operand']
  #allocation3 [shape = 'f32[16,32]{1,0:T(8,128)}', space=vmem, size = 0x2000, scoped, tag = 'scratch operand']
  %s0 = inlined_call_operand.vmem [shape: f32[16,32], index: 0, kind: input, shape index: {}]
  %s1 = inlined_call_operand.vmem [shape: bf16[32,128], index: 1, kind: input, shape index: {}]
  %s2 = inlined_call_operand.vmem [shape: bf16[32,128], index: 2, kind: input, shape index: {}]
  %s3 = inlined_call_operand.vmem [shape: f32[1,128], index: 3, kind: input, shape index: {}]
  %s4 = inlined_call_operand.vmem [shape: f32[1,128], index: 4, kind: input, shape index: {}]
  %s5 = inlined_call_operand.vmem [shape: bf16[128,32], index: 5, kind: input, shape index: {}]
  %s6 = inlined_call_operand.vmem [shape: f32[1,32], index: 6, kind: input, shape index: {}]
  %s7 = inlined_call_operand.vmem [shape: f32[1,32], index: 7, kind: input, shape index: {}]
  %s8 = inlined_call_operand.vmem [shape: f32[1,32], index: 8, kind: input, shape index: {}]
  %s9 = inlined_call_operand.hbm [shape: f32[16,32], index: 9, kind: output, shape index: {}]
  %s10 = sld [smem:[#allocation0]]
  $region54: #{tpu_custom_call.1} parent=0
    _
  %s12 = ssub.s32 1, %s10
  %s13 = scalar_select 0, %s12, %s10
  $region1: #{tpu_custom_call.1} parent=0
    #allocation4 [shape = 'u8[8192]{0}', space=vmem, size = 0x2000, scoped, tag = 'output window, operand 0, single buffered']
    #allocation5 [shape = 's32[1]{0}', space=sflag, size = 0x4, scoped, tag = 'scoped memory for tpu_custom_call.1']
    %14 = vsyncpa [#allocation5], 0
    // Predicated region
    $region2: #{tpu_custom_call.1} parent=1 // pred_check
      _
    $region3: #{tpu_custom_call.1} parent=1 // pred_check_branch
      %16 = sbr.rel (0) target = $region5
    $region4: #{tpu_custom_call.1} parent=1 // pred_region
      _
    $region5: #{tpu_custom_call.1} parent=1 // pred_fallthru
      _
    // Predicated region
    $region6: #{tpu_custom_call.1} parent=1 // pred_check
      _
    $region7: #{tpu_custom_call.1} parent=1 // pred_check_branch
      %18 = sbr.rel (0) target = $region9
    $region8: #{tpu_custom_call.1} parent=1 // pred_region
      _
    $region9: #{tpu_custom_call.1} parent=1 // pred_fallthru
      _
    // Predicated region
    $region10: #{tpu_custom_call.1} parent=1 // pred_check
      _
    $region11: #{tpu_custom_call.1} parent=1 // pred_check_branch
      %20 = sbr.rel (0) target = $region13
    $region12: #{tpu_custom_call.1} parent=1 // pred_region
      _
    $region13: #{tpu_custom_call.1} parent=1 // pred_fallthru
      _
    // Predicated region
    $region14: #{tpu_custom_call.1} parent=1 // pred_check
      _
    $region15: #{tpu_custom_call.1} parent=1 // pred_check_branch
      %22 = sbr.rel (0) target = $region17
    $region16: #{tpu_custom_call.1} parent=1 // pred_region
      _
    $region17: #{tpu_custom_call.1} parent=1 // pred_fallthru
      _
    // Predicated region
    $region18: #{tpu_custom_call.1} parent=1 // pred_check
      _
    $region19: #{tpu_custom_call.1} parent=1 // pred_check_branch
      %24 = sbr.rel (0) target = $region21
    $region20: #{tpu_custom_call.1} parent=1 // pred_region
      _
    $region21: #{tpu_custom_call.1} parent=1 // pred_fallthru
      _
    // Predicated region
    $region22: #{tpu_custom_call.1} parent=1 // pred_check
      _
    $region23: #{tpu_custom_call.1} parent=1 // pred_check_branch
      %26 = sbr.rel (0) target = $region25
    $region24: #{tpu_custom_call.1} parent=1 // pred_region
      _
    $region25: #{tpu_custom_call.1} parent=1 // pred_fallthru
      _
    // Predicated region
    $region26: #{tpu_custom_call.1} parent=1 // pred_check
      _
    $region27: #{tpu_custom_call.1} parent=1 // pred_check_branch
      %28 = sbr.rel (0) target = $region29
    $region28: #{tpu_custom_call.1} parent=1 // pred_region
      _
    $region29: #{tpu_custom_call.1} parent=1 // pred_fallthru
      _
    // Predicated region
    $region30: #{tpu_custom_call.1} parent=1 // pred_check
      _
    $region31: #{tpu_custom_call.1} parent=1 // pred_check_branch
      %30 = sbr.rel (0) target = $region33
    $region32: #{tpu_custom_call.1} parent=1 // pred_region
      _
    $region33: #{tpu_custom_call.1} parent=1 // pred_fallthru
      _
    // Predicated region
    $region34: #{tpu_custom_call.1} parent=1 // pred_check
      _
    $region35: #{tpu_custom_call.1} parent=1 // pred_check_branch
      %32 = sbr.rel (0) target = $region37
    $region36: #{tpu_custom_call.1} parent=1 // pred_region
      _
    $region37: #{tpu_custom_call.1} parent=1 // pred_fallthru
      _
    %p34 = scmp.eq.s32.totalorder 0, 0
    // Predicated region
    $region38: #{tpu_custom_call.1} parent=1 // pred_check
      %p35 = pneg %p34
    $region39: #{tpu_custom_call.1} parent=1 // pred_check_branch
      %37 = sbr.rel (%p35) target = $region41
    $region40: #{tpu_custom_call.1} parent=1 // pred_region
      %v38 = vld [vmem:[%s0] sm:$0xff]
      %v39 = vld [vmem:[%s0 + $0x8] sm:$0xff]
      %vm40 = vcmask 261120
      %v41 = vsel %vm40, %v38, 0.0
      %42 = vadd.xlane.f32.xlu0 %v41
      %v43 = vpop.xlane.xlu0 %42
      %v44 = vsel %vm40, %v39, 0.0
      %45 = vadd.xlane.f32.xlu0 %v44
      %v46 = vpop.xlane.xlu0 %45
      %v47 = vrcp.pop 32.0
      %v48 = vmul.f32 %v43, %v47
      %v49 = vmul.f32 %v46, %v47
      %v50 = vsub.f32 %v38, %v48
      %v51 = vsub.f32 %v39, %v49
      %v52 = vmul.f32 %v50, %v50
      %v53 = vmul.f32 %v51, %v51
      %v54 = vsel %vm40, %v52, 0.0
      %55 = vadd.xlane.f32.xlu0 %v54
      %v56 = vpop.xlane.xlu0 %55
      %v57 = vsel %vm40, %v53, 0.0
      %58 = vadd.xlane.f32.xlu0 %v57
      %v59 = vpop.xlane.xlu0 %58
      %v60 = vmul.f32 %v56, %v47
      %v61 = vmul.f32 %v59, %v47
      %v62 = vadd.f32 %v60, 1e-05
      %v63 = vadd.f32 %v61, 1e-05
      %v64 = vrsqrt.pop %v62
      %v65 = vrsqrt.pop %v63
      %v66 = vmul.f32 %v50, %v64
      %v67 = vmul.f32 %v51, %v65
      %v68 = vld [vmem:[%s7] sm:$0x1]
      %v70 = vlaneseq
      %v71 = vshrl.u32 %v70, 7
      %v72 = vsub.s32 0, %v71
      %v73 = vrot.slane %v68, %v72
      %v75 = vmul.f32 %v66, %v73
      %v76 = vmul.f32 %v67, %v73
      %v77 = vld [vmem:[%s8] sm:$0x1]
      %v79 = vlaneseq
      %v80 = vshrl.u32 %v79, 7
      %v81 = vsub.s32 0, %v80
      %v82 = vrot.slane %v77, %v81
      %v84 = vadd.f32 %v75, %v82
      %v85 = vadd.f32 %v76, %v82
      %v86 = vpack.c.bf16 %v85, %v84
      %87 = vst.msk [vmem:[#allocation2] sm:$0xff] %vm40, %v86
      %88 = vst.msk [vmem:[#allocation3] sm:$0xff] %vm40, 0.0
      %89 = vst.msk [vmem:[#allocation3 + $0x8] sm:$0xff] %vm40, 0.0
    $region41: #{tpu_custom_call.1} parent=1 // pred_fallthru
      _
    %v90 = vld [vmem:[#allocation2] sm:$0xff]
    %v91 = vld [vmem:[%s1] sm:$0xf]
    %v92 = vld [vmem:[%s1 + $0x4] sm:$0xf]
    %v93 = vld [vmem:[%s1 + $0x8] sm:$0xf]
    %v94 = vld [vmem:[%s1 + $0xc] sm:$0xf]
    %v95 = vld [vmem:[%s3] sm:$0x1]
    %v97 = vlaneseq
    %v98 = vshrl.u32 %v97, 7
    %v99 = vsub.s32 0, %v98
    %v100 = vrot.slane %v95, %v99
    %v106 = vunpack.c.l.b16 %v91
    %v107 = vunpack.c.l.b16 %v92
    %v108 = vunpack.c.l.b16 %v93
    %v109 = vunpack.c.l.b16 %v94
    %v110 = vpack.c.b16 %v107, %v106
    %v111 = vpack.c.b16 %v109, %v108
    %vm114 = vcmask 261120
    %v116 = vsel %vm114, %v90, 0
    %118 = vmatprep.subr.bf16.mxu0 0
    %119 = vmatpush1.bf16.msra.mxu0 %v110
    %120 = vmatprep.subr.bf16.mxu0 0
    %121 = vmatpush1.bf16.msra.mxu0 %v111
    %122 = vmatprep.subr.bf16.mxu0 0
    %123 = vmatpush1.bf16.msra.mxu0 0
    %124 = vmatprep.subr.bf16.mxu0 0
    %125 = vmatpush1.bf16.msra.mxu0 0
    %126 = vmatprep.subr.bf16.mxu0 0
    %127 = vmatpush1.bf16.msra.mxu0 0
    %128 = vmatprep.subr.bf16.mxu0 0
    %129 = vmatpush1.bf16.msra.mxu0 0
    %130 = vmatprep.subr.bf16.mxu0 0
    %131 = vmatpush1.bf16.msra.mxu0 0
    %132 = vmatprep.subr.bf16.mxu0 0
    %133 = vmatpush1.bf16.msra.mxu0 0
    %134 = vmatprep.subr.bf16.mxu0 0
    %135 = vmatpush1.bf16.msra.mxu0 0
    %136 = vmatprep.subr.bf16.mxu0 0
    %137 = vmatpush1.bf16.msra.mxu0 0
    %138 = vmatprep.subr.bf16.mxu0 0
    %139 = vmatpush1.bf16.msra.mxu0 0
    %140 = vmatprep.subr.bf16.mxu0 0
    %141 = vmatpush1.bf16.msra.mxu0 0
    %142 = vmatprep.subr.bf16.mxu0 0
    %143 = vmatpush1.bf16.msra.mxu0 0
    %144 = vmatprep.subr.bf16.mxu0 0
    %145 = vmatpush1.bf16.msra.mxu0 0
    %146 = vmatprep.subr.bf16.mxu0 0
    %147 = vmatpush1.bf16.msra.mxu0 0
    %148 = vmatprep.subr.bf16.mxu0 0
    %149 = vmatpush1.bf16.msra.mxu0 0
    %150 = vmatprep.mubr.bf16.mxu0 0
    %151 = vmatmul.mubr.bf16.gmra.mrb[0].mxu0 %v116
    %v152 = vpop.f32.mrb[0].mxu0
    %v153 = vadd.f32 %v100, %v152
    %v154 = vpop.f32.mrb[0].mxu0
    %v155 = vpop.f32.mrb[0].mxu0
    %v156 = vadd.f32 %v100, %v155
    %v157 = vpop.f32.mrb[0].mxu0
    %158 = vdwg.mxu0
    %v159 = vld [vmem:[%s2] sm:$0xf]
    %v160 = vld [vmem:[%s2 + $0x4] sm:$0xf]
    %v161 = vld [vmem:[%s2 + $0x8] sm:$0xf]
    %v162 = vld [vmem:[%s2 + $0xc] sm:$0xf]
    %v163 = vld [vmem:[%s4] sm:$0x1]
    %v165 = vlaneseq
    %v166 = vshrl.u32 %v165, 7
    %v167 = vsub.s32 0, %v166
    %v168 = vrot.slane %v163, %v167
    %v174 = vunpack.c.l.b16 %v159
    %v175 = vunpack.c.l.b16 %v160
    %v176 = vunpack.c.l.b16 %v161
    %v177 = vunpack.c.l.b16 %v162
    %v178 = vpack.c.b16 %v175, %v174
    %v179 = vpack.c.b16 %v177, %v176
    %182 = vmatprep.subr.bf16.mxu0 0
    %183 = vmatpush1.bf16.msra.mxu0 %v178
    %184 = vmatprep.subr.bf16.mxu0 0
    %185 = vmatpush1.bf16.msra.mxu0 %v179
    %186 = vmatprep.subr.bf16.mxu0 0
    %187 = vmatpush1.bf16.msra.mxu0 0
    %188 = vmatprep.subr.bf16.mxu0 0
    %189 = vmatpush1.bf16.msra.mxu0 0
    %190 = vmatprep.subr.bf16.mxu0 0
    %191 = vmatpush1.bf16.msra.mxu0 0
    %192 = vmatprep.subr.bf16.mxu0 0
    %193 = vmatpush1.bf16.msra.mxu0 0
    %194 = vmatprep.subr.bf16.mxu0 0
    %195 = vmatpush1.bf16.msra.mxu0 0
    %196 = vmatprep.subr.bf16.mxu0 0
    %197 = vmatpush1.bf16.msra.mxu0 0
    %198 = vmatprep.subr.bf16.mxu0 0
    %199 = vmatpush1.bf16.msra.mxu0 0
    %200 = vmatprep.subr.bf16.mxu0 0
    %201 = vmatpush1.bf16.msra.mxu0 0
    %202 = vmatprep.subr.bf16.mxu0 0
    %203 = vmatpush1.bf16.msra.mxu0 0
    %204 = vmatprep.subr.bf16.mxu0 0
    %205 = vmatpush1.bf16.msra.mxu0 0
    %206 = vmatprep.subr.bf16.mxu0 0
    %207 = vmatpush1.bf16.msra.mxu0 0
    %208 = vmatprep.subr.bf16.mxu0 0
    %209 = vmatpush1.bf16.msra.mxu0 0
    %210 = vmatprep.subr.bf16.mxu0 0
    %211 = vmatpush1.bf16.msra.mxu0 0
    %212 = vmatprep.subr.bf16.mxu0 0
    %213 = vmatpush1.bf16.msra.mxu0 0
    %214 = vmatprep.mubr.bf16.mxu0 0
    %215 = vmatmul.mubr.bf16.gmra.mrb[0].mxu0 %v116
    %v216 = vpop.f32.mrb[0].mxu0
    %v217 = vadd.f32 %v168, %v216
    %v218 = vpop.f32.mrb[0].mxu0
    %v219 = vpop.f32.mrb[0].mxu0
    %v220 = vadd.f32 %v168, %v219
    %v221 = vpop.f32.mrb[0].mxu0
    %222 = vdwg.mxu0
    %v223 = vmul.f32 %v217, 0.5
    %v224 = vmul.f32 %v220, 0.5
    %v225 = vmul.f32 %v217, 0.70710677
    %v226 = vmul.f32 %v220, 0.70710677
    %v227 = verf.f32.pop %v225
    %v228 = verf.f32.pop %v226
    %v229 = vadd.f32 %v227, 1.0
    %v230 = vadd.f32 %v228, 1.0
    %v231 = vmul.f32 %v223, %v229
    %v232 = vmul.f32 %v224, %v230
    %v233 = vmul.f32 %v153, %v231
    %v234 = vmul.f32 %v156, %v232
    %v235 = vld [vmem:[#allocation3] sm:$0xff]
    %v236 = vld [vmem:[#allocation3 + $0x8] sm:$0xff]
    %v237 = vpack.c.bf16 %v234, %v233
    %v238 = vld [vmem:[%s5] sm:$0xf]
    %v239 = vld [vmem:[%s5 + $0x4] sm:$0xf]
    %v240 = vld [vmem:[%s5 + $0x8] sm:$0xf]
    %v241 = vld [vmem:[%s5 + $0xc] sm:$0xf]
    %v242 = vld [vmem:[%s5 + $0x10] sm:$0xf]
    %v243 = vld [vmem:[%s5 + $0x14] sm:$0xf]
    %v244 = vld [vmem:[%s5 + $0x18] sm:$0xf]
    %v245 = vld [vmem:[%s5 + $0x1c] sm:$0xf]
    %v246 = vld [vmem:[%s5 + $0x20] sm:$0xf]
    %v247 = vld [vmem:[%s5 + $0x24] sm:$0xf]
    %v248 = vld [vmem:[%s5 + $0x28] sm:$0xf]
    %v249 = vld [vmem:[%s5 + $0x2c] sm:$0xf]
    %v250 = vld [vmem:[%s5 + $0x30] sm:$0xf]
    %v251 = vld [vmem:[%s5 + $0x34] sm:$0xf]
    %v252 = vld [vmem:[%s5 + $0x38] sm:$0xf]
    %v253 = vld [vmem:[%s5 + $0x3c] sm:$0xf]
    %v270 = vunpack.c.l.b16 %v238
    %v271 = vunpack.c.l.b16 %v239
    %v272 = vunpack.c.l.b16 %v240
    %v273 = vunpack.c.l.b16 %v241
    %v274 = vunpack.c.l.b16 %v242
    %v275 = vunpack.c.l.b16 %v243
    %v276 = vunpack.c.l.b16 %v244
    %v277 = vunpack.c.l.b16 %v245
    %v278 = vunpack.c.l.b16 %v246
    %v279 = vunpack.c.l.b16 %v247
    %v280 = vunpack.c.l.b16 %v248
    %v281 = vunpack.c.l.b16 %v249
    %v282 = vunpack.c.l.b16 %v250
    %v283 = vunpack.c.l.b16 %v251
    %v284 = vunpack.c.l.b16 %v252
    %v285 = vunpack.c.l.b16 %v253
    %v286 = vpack.c.b16 %v271, %v270
    %v287 = vpack.c.b16 %v273, %v272
    %v288 = vpack.c.b16 %v275, %v274
    %v289 = vpack.c.b16 %v277, %v276
    %v290 = vpack.c.b16 %v279, %v278
    %v291 = vpack.c.b16 %v281, %v280
    %v292 = vpack.c.b16 %v283, %v282
    %v293 = vpack.c.b16 %v285, %v284
    %302 = vmatprep.subr.bf16.mxu0 0
    %303 = vmatpush1.bf16.msra.mxu0 %v286
    %304 = vmatprep.subr.bf16.mxu0 0
    %305 = vmatpush1.bf16.msra.mxu0 %v287
    %306 = vmatprep.subr.bf16.mxu0 0
    %307 = vmatpush1.bf16.msra.mxu0 %v288
    %308 = vmatprep.subr.bf16.mxu0 0
    %309 = vmatpush1.bf16.msra.mxu0 %v289
    %310 = vmatprep.subr.bf16.mxu0 0
    %311 = vmatpush1.bf16.msra.mxu0 %v290
    %312 = vmatprep.subr.bf16.mxu0 0
    %313 = vmatpush1.bf16.msra.mxu0 %v291
    %314 = vmatprep.subr.bf16.mxu0 0
    %315 = vmatpush1.bf16.msra.mxu0 %v292
    %316 = vmatprep.subr.bf16.mxu0 0
    %317 = vmatpush1.bf16.msra.mxu0 %v293
    %318 = vmatprep.subr.bf16.mxu0 0
    %319 = vmatpush1.bf16.msra.mxu0 0
    %320 = vmatprep.subr.bf16.mxu0 0
    %321 = vmatpush1.bf16.msra.mxu0 0
    %322 = vmatprep.subr.bf16.mxu0 0
    %323 = vmatpush1.bf16.msra.mxu0 0
    %324 = vmatprep.subr.bf16.mxu0 0
    %325 = vmatpush1.bf16.msra.mxu0 0
    %326 = vmatprep.subr.bf16.mxu0 0
    %327 = vmatpush1.bf16.msra.mxu0 0
    %328 = vmatprep.subr.bf16.mxu0 0
    %329 = vmatpush1.bf16.msra.mxu0 0
    %330 = vmatprep.subr.bf16.mxu0 0
    %331 = vmatpush1.bf16.msra.mxu0 0
    %332 = vmatprep.subr.bf16.mxu0 0
    %333 = vmatpush1.bf16.msra.mxu0 0
    %334 = vmatprep.mubr.bf16.mxu0 0
    %335 = vmatmul.mubr.bf16.gmra.mrb[0].mxu0 %v237
    %v336 = vpop.f32.mrb[0].mxu0
    %v337 = vadd.f32 0.0, %v336
    %v338 = vpop.f32.mrb[0].mxu0
    %v339 = vpop.f32.mrb[0].mxu0
    %v340 = vadd.f32 0.0, %v339
    %v341 = vpop.f32.mrb[0].mxu0
    %342 = vdwg.mxu0
    %v343 = vadd.f32 %v235, %v337
    %v344 = vadd.f32 %v236, %v340
    %345 = vst.msk [vmem:[#allocation3] sm:$0xff] %vm114, %v343
    %346 = vst.msk [vmem:[#allocation3 + $0x8] sm:$0xff] %vm114, %v344
    // Predicated region
    $region42: #{tpu_custom_call.1} parent=1 // pred_check
      %p347 = pneg %p34
    $region43: #{tpu_custom_call.1} parent=1 // pred_check_branch
      %349 = sbr.rel (%p347) target = $region45
    $region44: #{tpu_custom_call.1} parent=1 // pred_region
      %v350 = vld [vmem:[#allocation3] sm:$0xff]
      %v351 = vld [vmem:[#allocation3 + $0x8] sm:$0xff]
      %v352 = vld [vmem:[%s6] sm:$0x1]
      %v354 = vlaneseq
      %v355 = vshrl.u32 %v354, 7
      %v356 = vsub.s32 0, %v355
      %v357 = vrot.slane %v352, %v356
      %v359 = vadd.f32 %v350, %v357
      %v360 = vadd.f32 %v351, %v357
      %361 = vst.msk [vmem:[#allocation4] sm:$0xff] %vm114, %v359
      %362 = vst.msk [vmem:[#allocation4 + $0x8] sm:$0xff] %vm114, %v360
    $region45: #{tpu_custom_call.1} parent=1 // pred_fallthru
      _
    // Predicated region
    $region46: #{tpu_custom_call.1} parent=1 // pred_check
      _
    $region47: #{tpu_custom_call.1} parent=1 // pred_check_branch
      %364 = sbr.rel (0) target = $region49
    $region48: #{tpu_custom_call.1} parent=1 // pred_region
      %s366 = ssub.s32 256, 256
      %367 = vsyncadd [#allocation5], %s366
      %s368 = sshll.u32 [#allocation4], 4
      %s369 = int_to_ptr.vmem [resolvable:$true] %s368
      %374 = dma.vmem_to_hbm [thread:$0]  %s369, 256, %s9, [#allocation5], 128, 128, 8
    $region49: #{tpu_custom_call.1} parent=1 // pred_fallthru
      _
    // Predicated region
    $region50: #{tpu_custom_call.1} parent=1 // pred_check
      _
    $region51: #{tpu_custom_call.1} parent=1 // pred_check_branch
      %376 = sbr.rel (0) target = $region53
    $region52: #{tpu_custom_call.1} parent=1 // pred_region
      %377 = dma.done [#allocation5], 256
    $region53: #{tpu_custom_call.1} parent=1 // pred_fallthru
      _
    %378 = vsyncpa [#allocation5], 1

</llo_original>
